<compile_context>
chip_gen: v6e
topology: v6e:2x2x1
jax: 0.10.0
libtpu: 0.0.40
codegen_flags: <defaults>
</compile_context>

<pallas_src>
import functools

import jax
import jax.numpy as jnp
from jax.experimental import pallas as pl
from jax.experimental.pallas import tpu as pltpu


def _round_up(x, m):
    return ((x + m - 1) // m) * m


def _num_tensorcores():
    """Best-effort TensorCore-per-chip count (2 on v7x, 1 on v5e/v6e)."""
    try:
        info = pltpu.get_tpu_info()
        for name in ("num_cores", "tensorcore_count", "num_tensorcores",
                     "core_count"):
            n = getattr(info, name, None)
            if n:
                return int(n)
    except Exception:
        pass
    try:
        kind = jax.devices()[0].device_kind.lower()
        if "v7" in kind:
            return 2
    except Exception:
        pass
    return 1


def _hard_loss_kernel(logits_ref, tgt_ref, part_ref, acc_ref,
                      *, pad_id, n_rows):
    c = pl.program_id(0)   # core-split index ("parallel")
    i = pl.program_id(1)   # row-tile index   ("arbitrary" reduction axis)

    @pl.when(i == 0)
    def _():
        acc_ref[...] = jnp.zeros_like(acc_ref)

    x = logits_ref[...]                                   # (T, V) native dtype
    tgt = tgt_ref[...]                                    # (T, 1) int32
    T, V = x.shape

    # Logical (unclamped) global row index of each sublane row in this block:
    # masks both the ragged tail and any clamped/duplicated overhang tile.
    base = (c * pl.num_programs(1) + i) * T
    row_ids = base + jax.lax.broadcasted_iota(jnp.int32, (T, 1), 0)
    in_bounds = row_ids < n_rows

    # Fused, numerically stable CE: center once, keep a single f32 temporary.
    m = jnp.max(x, axis=-1, keepdims=True)                # (T, 1) native dtype
    xc = (x - m).astype(jnp.float32)                      # (T, V) f32, <= 0

    lse_c = jnp.log(jnp.sum(jnp.exp(xc), axis=-1, keepdims=True))   # (T, 1)

    # Target-logit gather via (1, V) lane-iota broadcast against (T, 1) tgt.
    vocab_ids = jax.lax.broadcasted_iota(jnp.int32, (1, V), 1)
    tgt_c = jnp.sum(jnp.where(vocab_ids == tgt, xc, 0.0),
                    axis=-1, keepdims=True)               # (T, 1)

    valid = jnp.logical_and(tgt != pad_id, in_bounds)     # (T, 1) bool
    # True select (not multiply-by-mask): OOB garbage rows may carry inf/NaN.
    per_row = jnp.where(valid, lse_c - tgt_c, 0.0)        # (T, 1)

    row_sum = jnp.sum(per_row, axis=0, keepdims=True)                    # (1,1)
    row_cnt = jnp.sum(valid.astype(jnp.float32), axis=0, keepdims=True)  # (1,1)

    # Lane-resident accumulation: lane 0 = loss sum, lane 1 = valid count.
    lane = jax.lax.broadcasted_iota(jnp.int32, (1, 128), 1)
    acc_ref[...] += jnp.where(lane == 0, row_sum,
                              jnp.where(lane == 1, row_cnt, 0.0))

    @pl.when(i == pl.num_programs(1) - 1)
    def _():
        part_ref[0] = acc_ref[...]        # fully-initialized (1, 128) block


def hard_loss(y_pred, y_true, *, alpha, pad_id, row_tile=None, n_split=None):
    """alpha * cross_entropy(y_pred.reshape(-1, V), y_true.reshape(-1),
    ignore_index=pad_id), mean over non-pad targets (torch semantics)."""
    V = y_pred.shape[-1]
    logits = y_pred.reshape(-1, V)                 # streamed in native dtype
    targets = y_true.reshape(-1, 1).astype(jnp.int32)
    N = logits.shape[0]
    itemsize = jnp.dtype(logits.dtype).itemsize

    # Sublane packing alignment: 8 rows (f32), 16 (bf16), 32 (int8/fp8).
    align = 8 * max(1, 4 // itemsize)

    # Device-aware VMEM budget (v7x has 64 MiB VMEM vs 128 MiB on v5e/v6e).
    try:
        vmem_cap = int(pltpu.get_tpu_info().vmem_capacity_bytes)
    except Exception:  # conservative fallback, safe on every generation
        vmem_cap = 64 * 1024 * 1024
    vmem_limit = min(vmem_cap, 128 * 1024 * 1024) // 2

    # Live footprint per step ~ 2 double-buffered input blocks + ~2-4
    # block-equivalents of f32 temporaries (centered tile + exp). Cap blocks
    # at 4 MiB on 64 MiB-VMEM chips (v7x), 8 MiB otherwise.
    block_cap = (4 * 1024 * 1024 if vmem_cap <= 64 * 1024 * 1024
                 else 8 * 1024 * 1024)
    block_budget = min(vmem_limit // 6, block_cap)

    if row_tile is None:
        rt = max(1, block_budget // max(1, V * itemsize))
        rt = min(rt, _round_up(N, align))
        row_tile = max(align, (rt // align) * align)
    else:
        row_tile = max(align, _round_up(int(row_tile), align))

    num_tiles = -(-N // row_tile)

    # Shard the row loop across both TensorCores whenever the chip has two
    # (v7x megacore); the clamped index_map below makes odd tile counts safe.
    if n_split is None:
        n_split = 2 if (num_tiles >= 2 and _num_tensorcores() >= 2) else 1
    n_split = max(1, min(int(n_split), num_tiles))
    tiles_per_split = -(-num_tiles // n_split)
    last_tile = num_tiles - 1

    def logits_map(c, i):
        return (jnp.minimum(c * tiles_per_split + i, last_tile), 0)

    def tgt_map(c, i):
        return (jnp.minimum(c * tiles_per_split + i, last_tile), 0)

    kernel = functools.partial(_hard_loss_kernel, pad_id=pad_id, n_rows=N)

    cost = pl.CostEstimate(
        flops=int(6 * N * V),
        transcendentals=int(N * V),
        bytes_accessed=int(N * V * itemsize + N * 4 + n_split * 128 * 4),
    )

    partials = pl.pallas_call(
        kernel,
        out_shape=jax.ShapeDtypeStruct((n_split, 1, 128), jnp.float32),
        grid_spec=pltpu.PrefetchScalarGridSpec(
            num_scalar_prefetch=0,
            grid=(n_split, tiles_per_split),
            in_specs=[
                pl.BlockSpec((row_tile, V), logits_map),
                pl.BlockSpec((row_tile, 1), tgt_map),
            ],
            out_specs=pl.BlockSpec((1, 1, 128), lambda c, i: (c, 0, 0)),
            scratch_shapes=[
                pltpu.VMEM((1, 128), jnp.float32),
            ],
        ),
        compiler_params=pltpu.CompilerParams(
            dimension_semantics=("parallel", "arbitrary"),
            vmem_limit_bytes=int(vmem_limit),
        ),
        cost_estimate=cost,
    )(logits, targets)

    loss_sum = jnp.sum(partials[:, 0, 0])
    cnt = jnp.sum(partials[:, 0, 1])
    # NaN when every target == pad_id (matches torch mean reduction).
    return jnp.float32(alpha) * loss_sum / cnt


def _reference(y_pred, y_true, *, alpha, pad_id):
    V = y_pred.shape[-1]
    logits = y_pred.reshape(-1, V).astype(jnp.float32)
    tgts = y_true.reshape(-1)
    lse = jax.scipy.special.logsumexp(logits, axis=-1)
    tgt_logit = jnp.take_along_axis(logits, tgts[:, None], axis=-1)[:, 0]
    valid = tgts != pad_id
    return alpha * jnp.sum(jnp.where(valid, lse - tgt_logit, 0.0)) / jnp.sum(valid)


if __name__ == "__main__":
    key = jax.random.PRNGKey(0)
    k1, k2, k3, k4, k5, k6 = jax.random.split(key, 6)

    # Case 1: small shapes implied by the module (batch=2, seq=8, vocab=32).
    alpha, pad_id = 0.7, 0
    y_pred = jax.random.normal(k1, (2, 8, 32), dtype=jnp.float32)
    y_true = jax.random.randint(k2, (2, 8), 0, 32, dtype=jnp.int32)
    y_true = y_true.at[0, -2:].set(pad_id).at[1, 0].set(pad_id)
    out = jax.block_until_ready(
        hard_loss(y_pred, y_true, alpha=alpha, pad_id=pad_id))
    ref = _reference(y_pred, y_true, alpha=alpha, pad_id=pad_id)
    assert jnp.allclose(out, ref, rtol=1e-4, atol=1e-4), (out, ref)

    # Case 2: ragged tail mask + auto TC-split decision
    # (N = 500 rows, row_tile = 64 -> 8 tiles).
    alpha2, pad_id2 = 0.5, 3
    y_pred2 = jax.random.normal(k3, (2, 250, 128), dtype=jnp.float32)
    y_true2 = jax.random.randint(k4, (2, 250), 0, 128, dtype=jnp.int32)
    y_true2 = y_true2.at[0, :5].set(pad_id2).at[1, -7:].set(pad_id2)
    out2 = jax.block_until_ready(
        hard_loss(y_pred2, y_true2, alpha=alpha2, pad_id=pad_id2, row_tile=64))
    ref2 = _reference(y_pred2, y_true2, alpha=alpha2, pad_id=pad_id2)
    assert jnp.allclose(out2, ref2, rtol=1e-4, atol=1e-4), (out2, ref2)

    # Case 3: forced 2-way split with an ODD tile count (N = 72, row_tile = 16
    # -> 5 tiles) to exercise the clamped index_map + overhang-tile masking.
    alpha3, pad_id3 = 1.3, 7
    y_pred3 = jax.random.normal(k5, (3, 24, 64), dtype=jnp.float32)
    y_true3 = jax.random.randint(k6, (3, 24), 0, 64, dtype=jnp.int32)
    y_true3 = y_true3.at[0, :3].set(pad_id3).at[2, -4:].set(pad_id3)
    out3 = jax.block_until_ready(
        hard_loss(y_pred3, y_true3, alpha=alpha3, pad_id=pad_id3,
                  row_tile=16, n_split=2))
    ref3 = _reference(y_pred3, y_true3, alpha=alpha3, pad_id=pad_id3)
    assert jnp.allclose(out3, ref3, rtol=1e-4, atol=1e-4), (out3, ref3)

    print("KERNEL_OK")
</pallas_src>

<mosaic_0001>
module attributes {stable_mosaic.version = 11 : i64} {
  func.func @_hard_loss_kernel(%arg0: i32, %arg1: i32, %arg2: memref<16x32xf32, #tpu.memory_space<vmem>>, %arg3: memref<16x1xi32, #tpu.memory_space<vmem>>, %arg4: memref<1x1x128xf32, #tpu.memory_space<vmem>>, %arg5: memref<1x128xf32, #tpu.memory_space<vmem>>) attributes {dimension_semantics = [#tpu.dimension_semantics<parallel>, #tpu.dimension_semantics<arbitrary>], iteration_bounds = array<i64: 1, 1>, scalar_prefetch = 0 : i64, scratch_operands = 1 : i64, tpu.core_type = #tpu.core_type<tc>, window_params = [{transform_indices = @transform_0, window_bounds = array<i64: 16, 32>}, {transform_indices = @transform_1, window_bounds = array<i64: 16, 1>}, {transform_indices = @transform_2, window_bounds = array<i64: 1, 1, 128>}]} {
    %c0_i32 = arith.constant 0 : i32
    %0 = arith.cmpi eq, %arg1, %c0_i32 : i32
    %1 = arith.extui %0 : i1 to i32
    %c0_i32_0 = arith.constant 0 : i32
    %2 = arith.cmpi ne, %1, %c0_i32_0 : i32
    scf.if %2 {
      %cst_21 = arith.constant 0.000000e+00 : f32
      %59 = vector.broadcast %cst_21 : f32 to vector<1x128xf32>
      %c0_22 = arith.constant 0 : index
      %c0_23 = arith.constant 0 : index
      %60 = vector.load %arg5[%c0_22, %c0_23] : memref<1x128xf32, #tpu.memory_space<vmem>>, vector<1x128xf32>
      tpu.vector_store %arg5[%c0_22, %c0_23], %59 {strides = array<i32>} : memref<1x128xf32, #tpu.memory_space<vmem>>, vector<1x128xf32>,
    } else {
    }
    %c0 = arith.constant 0 : index
    %c0_1 = arith.constant 0 : index
    %3 = vector.load %arg2[%c0, %c0_1] : memref<16x32xf32, #tpu.memory_space<vmem>>, vector<16x32xf32>
    %c0_2 = arith.constant 0 : index
    %c0_3 = arith.constant 0 : index
    %4 = vector.load %arg3[%c0_2, %c0_3] : memref<16x1xi32, #tpu.memory_space<vmem>>, vector<16x1xi32>
    %c1_i32 = arith.constant 1 : i32
    %5 = arith.muli %arg0, %c1_i32 : i32
    %6 = arith.addi %5, %arg1 : i32
    %c16_i32 = arith.constant 16 : i32
    %7 = arith.muli %6, %c16_i32 : i32
    %8 = tpu.iota {dimensions = array<i32: 0>} : vector<16x1xi32>
    %9 = vector.broadcast %7 : i32 to vector<16x1xi32>
    %10 = arith.addi %9, %8 : vector<16x1xi32>
    %c16_i32_4 = arith.constant 16 : i32
    %11 = vector.broadcast %c16_i32_4 : i32 to vector<16x1xi32>
    %12 = arith.cmpi slt, %10, %11 : vector<16x1xi32>
    %cst = arith.constant dense<0xFF800000> : vector<16xf32>
    %13 = vector.multi_reduction <maximumf>, %3, %cst [1] : vector<16x32xf32> to vector<16xf32>
    %14 = vector.shape_cast %13 : vector<16xf32> to vector<16x1xf32>
    %15 = vector.broadcast %14 : vector<16x1xf32> to vector<16x32xf32>
    %16 = arith.subf %3, %15 : vector<16x32xf32>
    %17 = math.exp %16 : vector<16x32xf32>
    %cst_5 = arith.constant dense<0.000000e+00> : vector<16xf32>
    %18 = vector.multi_reduction <add>, %17, %cst_5 [1] : vector<16x32xf32> to vector<16xf32>
    %19 = vector.shape_cast %18 : vector<16xf32> to vector<16x1xf32>
    %20 = math.log %19 : vector<16x1xf32>
    %21 = tpu.iota {dimensions = array<i32: 1>} : vector<1x32xi32>
    %22 = vector.broadcast %21 : vector<1x32xi32> to vector<16x32xi32>
    %23 = vector.broadcast %4 : vector<16x1xi32> to vector<16x32xi32>
    %24 = arith.cmpi eq, %22, %23 : vector<16x32xi32>
    %cst_6 = arith.constant 0.000000e+00 : f32
    %25 = vector.broadcast %cst_6 : f32 to vector<16x32xf32>
    %26 = arith.select %24, %16, %25 : vector<16x32xi1>, vector<16x32xf32>
    %cst_7 = arith.constant dense<0.000000e+00> : vector<16xf32>
    %27 = vector.multi_reduction <add>, %26, %cst_7 [1] : vector<16x32xf32> to vector<16xf32>
    %28 = vector.shape_cast %27 : vector<16xf32> to vector<16x1xf32>
    %c0_i32_8 = arith.constant 0 : i32
    %29 = vector.broadcast %c0_i32_8 : i32 to vector<16x1xi32>
    %30 = arith.cmpi ne, %4, %29 : vector<16x1xi32>
    %31 = arith.andi %30, %12 : vector<16x1xi1>
    %32 = arith.subf %20, %28 : vector<16x1xf32>
    %cst_9 = arith.constant 0.000000e+00 : f32
    %33 = vector.broadcast %cst_9 : f32 to vector<16x1xf32>
    %34 = arith.select %31, %32, %33 : vector<16x1xi1>, vector<16x1xf32>
    %cst_10 = arith.constant dense<0.000000e+00> : vector<1xf32>
    %35 = vector.multi_reduction <add>, %34, %cst_10 [0] : vector<16x1xf32> to vector<1xf32>
    %36 = vector.shape_cast %35 : vector<1xf32> to vector<1x1xf32>
    %37 = arith.extui %31 : vector<16x1xi1> to vector<16x1xi32>
    %38 = arith.sitofp %37 : vector<16x1xi32> to vector<16x1xf32>
    %cst_11 = arith.constant dense<0.000000e+00> : vector<1xf32>
    %39 = vector.multi_reduction <add>, %38, %cst_11 [0] : vector<16x1xf32> to vector<1xf32>
    %40 = vector.shape_cast %39 : vector<1xf32> to vector<1x1xf32>
    %41 = tpu.iota {dimensions = array<i32: 1>} : vector<1x128xi32>
    %c0_12 = arith.constant 0 : index
    %c0_13 = arith.constant 0 : index
    %42 = vector.load %arg5[%c0_12, %c0_13] : memref<1x128xf32, #tpu.memory_space<vmem>>, vector<1x128xf32>
    %c0_i32_14 = arith.constant 0 : i32
    %43 = vector.broadcast %c0_i32_14 : i32 to vector<1x128xi32>
    %44 = arith.cmpi eq, %41, %43 : vector<1x128xi32>
    %c1_i32_15 = arith.constant 1 : i32
    %45 = vector.broadcast %c1_i32_15 : i32 to vector<1x128xi32>
    %46 = arith.cmpi eq, %41, %45 : vector<1x128xi32>
    %cst_16 = arith.constant 0.000000e+00 : f32
    %47 = vector.shape_cast %40 : vector<1x1xf32> to vector<1x1xf32>
    %48 = vector.broadcast %47 : vector<1x1xf32> to vector<1x128xf32>
    %49 = vector.broadcast %cst_16 : f32 to vector<1x128xf32>
    %50 = arith.select %46, %48, %49 : vector<1x128xi1>, vector<1x128xf32>
    %51 = vector.shape_cast %36 : vector<1x1xf32> to vector<1x1xf32>
    %52 = vector.broadcast %51 : vector<1x1xf32> to vector<1x128xf32>
    %53 = arith.select %44, %52, %50 : vector<1x128xi1>, vector<1x128xf32>
    %54 = arith.addf %42, %53 : vector<1x128xf32>
    %c0_17 = arith.constant 0 : index
    %c0_18 = arith.constant 0 : index
    %55 = vector.load %arg5[%c0_17, %c0_18] : memref<1x128xf32, #tpu.memory_space<vmem>>, vector<1x128xf32>
    tpu.vector_store %arg5[%c0_17, %c0_18], %54 {strides = array<i32>} : memref<1x128xf32, #tpu.memory_space<vmem>>, vector<1x128xf32>,
    %c0_i32_19 = arith.constant 0 : i32
    %56 = arith.cmpi eq, %arg1, %c0_i32_19 : i32
    %57 = arith.extui %56 : i1 to i32
    %c0_i32_20 = arith.constant 0 : i32
    %58 = arith.cmpi ne, %57, %c0_i32_20 : i32
    scf.if %58 {
      %c0_21 = arith.constant 0 : index
      %c0_22 = arith.constant 0 : index
      %59 = vector.load %arg5[%c0_21, %c0_22] : memref<1x128xf32, #tpu.memory_space<vmem>>, vector<1x128xf32>
      %c0_23 = arith.constant 0 : index
      %c0_24 = arith.constant 0 : index
      %c0_25 = arith.constant 0 : index
      %60 = vector.load %arg4[%c0_23, %c0_24, %c0_25] : memref<1x1x128xf32, #tpu.memory_space<vmem>>, vector<1x1x128xf32>
      %61 = vector.shape_cast %60 : vector<1x1x128xf32> to vector<1x128xf32>
      %62 = vector.shape_cast %59 : vector<1x128xf32> to vector<1x1x128xf32>
      tpu.vector_store %arg4[%c0_23, %c0_24, %c0_25], %62 {strides = array<i32>} : memref<1x1x128xf32, #tpu.memory_space<vmem>>, vector<1x1x128xf32>,
    } else {
    }
    return
  }
  func.func @transform_0(%arg0: i32, %arg1: i32) -> (i32, i32) {
    %c1_i32 = arith.constant 1 : i32
    %0 = arith.muli %arg0, %c1_i32 : i32
    %1 = arith.addi %0, %arg1 : i32
    %c0_i32 = arith.constant 0 : i32
    %2 = arith.minsi %1, %c0_i32 : i32
    %c0_i32_0 = arith.constant 0 : i32
    %c0_i32_1 = arith.constant 0 : i32
    return %2, %c0_i32_0 : i32, i32
  }
  func.func @transform_1(%arg0: i32, %arg1: i32) -> (i32, i32) {
    %c1_i32 = arith.constant 1 : i32
    %0 = arith.muli %arg0, %c1_i32 : i32
    %1 = arith.addi %0, %arg1 : i32
    %c0_i32 = arith.constant 0 : i32
    %2 = arith.minsi %1, %c0_i32 : i32
    %c0_i32_0 = arith.constant 0 : i32
    %c0_i32_1 = arith.constant 0 : i32
    return %2, %c0_i32_0 : i32, i32
  }
  func.func @transform_2(%arg0: i32, %arg1: i32) -> (i32, i32, i32) {
    %c0_i32 = arith.constant 0 : i32
    %c0_i32_0 = arith.constant 0 : i32
    %c0_i32_1 = arith.constant 0 : i32
    return %arg0, %c0_i32, %c0_i32_0 : i32, i32, i32
  }
}

</mosaic_0001>

<llo_original>
// kernel: tpu_custom_call.1
$region0: #{tpu_custom_call.1}
  #allocation0 [shape = 'u32[]', space=smem, size = 0x4, offset = 0x4, fixed_abs, tag = 'smem constant byte address 0x4 - core index']
  #allocation1 [shape = 'u32[144,128]{1,0:T(1,128)}', space=vmem, size = 0x12000, scoped, tag = 'internal scratch']
  #allocation2 [shape = 'f32[1,128]{1,0:T(1,128)}', space=vmem, size = 0x200, scoped, tag = 'scratch operand']
  %s0 = inlined_call_operand.vmem [shape: f32[16,32], index: 0, kind: input, shape index: {}]
  %s1 = inlined_call_operand.vmem [shape: s32[16,1], index: 1, kind: input, shape index: {}]
  %s2 = inlined_call_operand.hbm [shape: f32[1,1,128], index: 2, kind: output, shape index: {}]
  %s3 = sld [smem:[#allocation0]]
  $region26: #{tpu_custom_call.1} parent=0
    _
  %s5 = ssub.s32 1, %s3
  %s6 = scalar_select 0, %s5, %s3
  $region1: #{tpu_custom_call.1} parent=0
    #allocation3 [shape = 'u8[512]{0}', space=vmem, size = 0x400, scoped, tag = 'output window, operand 0, single buffered']
    #allocation4 [shape = 's32[1]{0}', space=sflag, size = 0x4, scoped, tag = 'scoped memory for tpu_custom_call.1']
    %7 = vsyncpa [#allocation4], 0
    // Predicated region
    $region2: #{tpu_custom_call.1} parent=1 // pred_check
      _
    $region3: #{tpu_custom_call.1} parent=1 // pred_check_branch
      %9 = sbr.rel (0) target = $region5
    $region4: #{tpu_custom_call.1} parent=1 // pred_region
      %s10 = sadd.s32 0, 0
      %p11 = scmp.lt.s32.totalorder %s10, 0
      %s12 = scalar_select %p11, %s10, 0
      %s13 = smul.u32 2, %s12
      %p14 = scmp.lt.s32.totalorder %s13, 1
      %s15 = scalar_select %p14, %s13, 1
      %s16 = smul.addr %s15, 8
      %s17 = scalar_lea.vmem %s0, %s16
      %s18 = sadd.s32 0, 0
      %p19 = scmp.lt.s32.totalorder %s18, 0
      %s20 = scalar_select %p19, %s18, 0
      %s21 = smul.u32 2, %s20
    $region5: #{tpu_custom_call.1} parent=1 // pred_fallthru
      _
    // Predicated region
    $region6: #{tpu_custom_call.1} parent=1 // pred_check
      _
    $region7: #{tpu_custom_call.1} parent=1 // pred_check_branch
      %23 = sbr.rel (0) target = $region9
    $region8: #{tpu_custom_call.1} parent=1 // pred_region
      %s24 = sadd.s32 0, 0
      %p25 = scmp.lt.s32.totalorder %s24, 0
      %s26 = scalar_select %p25, %s24, 0
      %s27 = smul.u32 2, %s26
      %p28 = scmp.lt.s32.totalorder %s27, 1
      %s29 = scalar_select %p28, %s27, 1
      %s30 = smul.addr %s29, 8
      %s31 = scalar_lea.vmem %s1, %s30
      %s32 = sadd.s32 0, 0
      %p33 = scmp.lt.s32.totalorder %s32, 0
      %s34 = scalar_select %p33, %s32, 0
      %s35 = smul.u32 2, %s34
    $region9: #{tpu_custom_call.1} parent=1 // pred_fallthru
      _
    %s36 = sadd.s32 0, 0
    %p37 = scmp.lt.s32.totalorder %s36, 0
    %s38 = scalar_select %p37, %s36, 0
    %s39 = smul.u32 2, %s38
    %p40 = scmp.lt.s32.totalorder %s39, 1
    %s41 = scalar_select %p40, %s39, 1
    %s42 = smul.addr %s41, 8
    %s43 = scalar_lea.vmem %s0, %s42
    %s44 = sadd.s32 0, 0
    %p45 = scmp.lt.s32.totalorder %s44, 0
    %s46 = scalar_select %p45, %s44, 0
    %s47 = smul.u32 2, %s46
    %p48 = scmp.lt.s32.totalorder %s47, 1
    %s49 = scalar_select %p48, %s47, 1
    %s50 = smul.addr %s49, 8
    %s51 = scalar_lea.vmem %s1, %s50
    %s52 = sadd.s32 0, 0
    %p53 = scmp.lt.s32.totalorder %s52, 0
    %s54 = scalar_select %p53, %s52, 0
    %s55 = smul.u32 2, %s54
    %p56 = scmp.lt.s32.totalorder %s55, 1
    %s57 = scalar_select %p56, %s55, 1
    %s58 = smul.addr %s57, 8
    %s59 = scalar_lea.vmem %s0, %s58
    %s60 = sadd.s32 0, 0
    %p61 = scmp.lt.s32.totalorder %s60, 0
    %s62 = scalar_select %p61, %s60, 0
    %s63 = smul.u32 2, %s62
    %s64 = sadd.s32 0, 0
    %p65 = scmp.lt.s32.totalorder %s64, 0
    %s66 = scalar_select %p65, %s64, 0
    %s67 = smul.u32 2, %s66
    %p68 = scmp.lt.s32.totalorder %s67, 1
    %s69 = scalar_select %p68, %s67, 1
    %s70 = smul.addr %s69, 8
    %s71 = scalar_lea.vmem %s1, %s70
    %s72 = sadd.s32 0, 0
    %p73 = scmp.lt.s32.totalorder %s72, 0
    %s74 = scalar_select %p73, %s72, 0
    %s75 = smul.u32 2, %s74
    %p76 = scmp.eq.s32.totalorder 0, 0
    // Predicated region
    $region10: #{tpu_custom_call.1} parent=1 // pred_check
      %p77 = pneg %p76
    $region11: #{tpu_custom_call.1} parent=1 // pred_check_branch
      %79 = sbr.rel (%p77) target = $region13
    $region12: #{tpu_custom_call.1} parent=1 // pred_region
      %80 = vst [vmem:[#allocation2] sm:$0x1] 0.0
    $region13: #{tpu_custom_call.1} parent=1 // pred_fallthru
      _
    %v81 = vld [vmem:[%s59] sm:$0xff]
    %v82 = vld [vmem:[%s59 + $0x8] sm:$0xff]
    %v83 = vld [vmem:[%s71] sm:$0xff]
    %v84 = vld [vmem:[%s71 + $0x8] sm:$0xff]
    %s85 = sadd.s32 0, 0
    %s86 = smul.u32 %s85, 16
    %v87 = vlaneseq
    %v88 = vshrl.u32 %v87, 7
    %v89 = vadd.s32 %v88, 8
    %v90 = vstv %s86
    %v91 = vadd.s32 %v90, %v88
    %v92 = vadd.s32 %v90, %v89
    %vm93 = vcmp.lt.s32.totalorder %v91, 16
    %vm94 = vcmp.lt.s32.totalorder %v92, 16
    %vm95 = vcmask 261120
    %v96 = vsel %vm95, %v81, -inf
    %97 = vmax.xlane.f32.xlu0 %v96
    %v98 = vpop.xlane.xlu0 %97
    %v99 = vsel %vm95, %v82, -inf
    %100 = vmax.xlane.f32.xlu0 %v99
    %v101 = vpop.xlane.xlu0 %100
    %v102 = vsub.f32 %v81, %v98
    %v103 = vsub.f32 %v82, %v101
    %v104 = vmul.f32 %v102, 1.442695
    %v105 = vpow.pop %v104
    %v106 = vmul.f32 %v103, 1.442695
    %v107 = vpow.pop %v106
    %v108 = vsel %vm95, %v105, 0.0
    %109 = vadd.xlane.f32.xlu0 %v108
    %v110 = vpop.xlane.xlu0 %109
    %v111 = vsel %vm95, %v107, 0.0
    %112 = vadd.xlane.f32.xlu0 %v111
    %v113 = vpop.xlane.xlu0 %112
    %v114 = vlog2.pop %v110
    %v115 = vmul.f32 %v114, 0.6931472
    %v116 = vlog2.pop %v113
    %v117 = vmul.f32 %v116, 0.6931472
    %v118 = vlaneseq
    %v119 = vand.u32 %v118, 127
    %120 = vset.pattern.permute.xlu0 0
    %121 = vperm.xlu0 %120, %v83
    %v122 = vpop.permute.xlu0 %121
    %123 = vset.pattern.permute.xlu0 0
    %124 = vperm.xlu0 %123, %v84
    %v125 = vpop.permute.xlu0 %124
    %vm126 = vcmp.eq.s32.totalorder %v119, %v122
    %vm127 = vcmp.eq.s32.totalorder %v119, %v125
    %v128 = vsel %vm126, %v102, 0.0
    %v129 = vsel %vm127, %v103, 0.0
    %v130 = vsel %vm95, %v128, 0.0
    %131 = vadd.xlane.f32.xlu0 %v130
    %v132 = vpop.xlane.xlu0 %131
    %v133 = vsel %vm95, %v129, 0.0
    %134 = vadd.xlane.f32.xlu0 %v133
    %v135 = vpop.xlane.xlu0 %134
    %vm136 = vcmp.ne.s32.totalorder %v83, 0
    %vm137 = vcmp.ne.s32.totalorder %v84, 0
    %vm138 = vmand %vm136, %vm93
    %vm139 = vmand %vm137, %vm94
    %v140 = vsub.f32 %v115, %v132
    %v141 = vsub.f32 %v117, %v135
    %v142 = vsel %vm138, %v140, 0.0
    %v143 = vsel %vm139, %v141, 0.0
    %vm144 = vcmask 7168
    %v145 = vsel %vm144, %v142, 0.0
    %v146 = vsel %vm144, %v143, 0.0
    %v147 = vadd.f32 %v145, %v146
    %v148 = vrot.slane %v147, 4
    %v149 = vadd.f32 %v147, %v148
    %v150 = vrot.slane %v149, 2
    %v151 = vadd.f32 %v149, %v150
    %v152 = vrot.slane %v151, 1
    %v153 = vadd.f32 %v151, %v152
    %v154 = vsel %vm138, 1, 0
    %v155 = vsel %vm139, 1, 0
    %v156 = vcvt.s32.f32 %v154
    %v157 = vcvt.s32.f32 %v155
    %v158 = vsel %vm144, %v156, 0.0
    %v159 = vsel %vm144, %v157, 0.0
    %v160 = vadd.f32 %v158, %v159
    %v161 = vrot.slane %v160, 4
    %v162 = vadd.f32 %v160, %v161
    %v163 = vrot.slane %v162, 2
    %v164 = vadd.f32 %v162, %v163
    %v165 = vrot.slane %v164, 1
    %v166 = vadd.f32 %v164, %v165
    %v167 = vld [vmem:[#allocation2] sm:$0x1]
    %vm168 = vcmp.eq.s32.totalorder %v119, 0
    %vm169 = vcmp.eq.s32.totalorder %v119, 1
    %171 = vset.pattern.permute.xlu0 0
    %172 = vperm.xlu0 %171, %v166
    %v173 = vpop.permute.xlu0 %172
    %v175 = vsel %vm169, %v173, 0.0
    %177 = vset.pattern.permute.xlu0 0
    %178 = vperm.xlu0 %177, %v153
    %v179 = vpop.permute.xlu0 %178
    %v181 = vsel %vm168, %v179, %v175
    %v182 = vadd.f32 %v167, %v181
    %183 = vst [vmem:[#allocation2] sm:$0x1] %v182
    // Predicated region
    $region14: #{tpu_custom_call.1} parent=1 // pred_check
      %p184 = pneg %p76
    $region15: #{tpu_custom_call.1} parent=1 // pred_check_branch
      %186 = sbr.rel (%p184) target = $region17
    $region16: #{tpu_custom_call.1} parent=1 // pred_region
      %v187 = vld [vmem:[#allocation2] sm:$0x1]
      %188 = vst [vmem:[#allocation3] sm:$0x1] %v187
    $region17: #{tpu_custom_call.1} parent=1 // pred_fallthru
      _
    // Predicated region
    $region18: #{tpu_custom_call.1} parent=1 // pred_check
      _
    $region19: #{tpu_custom_call.1} parent=1 // pred_check_branch
      %190 = sbr.rel (0) target = $region21
    $region20: #{tpu_custom_call.1} parent=1 // pred_region
      %s192 = ssub.s32 16, 16
      %193 = vsyncadd [#allocation4], %s192
      %s195 = sshll.u32 [#allocation3], 4
      %s196 = int_to_ptr.vmem [resolvable:$true] %s195
      %198 = dma.vmem_to_hbm [thread:$0]  %s196, 16, %s2, [#allocation4]
    $region21: #{tpu_custom_call.1} parent=1 // pred_fallthru
      _
    // Predicated region
    $region22: #{tpu_custom_call.1} parent=1 // pred_check
      _
    $region23: #{tpu_custom_call.1} parent=1 // pred_check_branch
      %200 = sbr.rel (0) target = $region25
    $region24: #{tpu_custom_call.1} parent=1 // pred_region
      %201 = dma.done [#allocation4], 16
    $region25: #{tpu_custom_call.1} parent=1 // pred_fallthru
      _
    %202 = vsyncpa [#allocation4], 1

</llo_original>
